<compile_context>
chip_gen: v7x
topology: tpu7x:2x2x1
jax: 0.10.0
libtpu: 0.0.40
codegen_flags: <defaults>
</compile_context>

<pallas_src>
import functools
import math

import jax
import jax.numpy as jnp
from jax.experimental import pallas as pl
from jax.experimental.pallas import tpu as pltpu


def _elu(v):
    return jnp.where(v > 0, v, jnp.exp(jnp.minimum(v, 0.0)) - 1.0)


def _make_kernel(T, H, W, C, L):
    HW = H * W

    def kernel(x_ref, w1_ref, b1_ref, w2_ref, b2_ref, o_ref):
        # x_ref / o_ref : (C, L) f32 (lane-dense), L = batch_block*T*H*W
        # w1_ref: (C, 8C) bf16, w2_ref: (2C, 8C) bf16, b*_ref: (Cout, 1) f32
        x = x_ref[...].astype(jnp.float32)

        # Per-lane causal validity of the (t, h, w) coordinate; shared by both convs.
        idx = jax.lax.broadcasted_iota(jnp.int32, (1, L), 1)
        t_ok = (idx % (T * HW)) >= HW      # t >= 1
        h_ok = (idx % HW) >= W             # h >= 1
        w_ok = (idx % W) >= 1              # w >= 1

        def im2col(a):
            """(C, L) f32 -> (8C, L) bf16: the 8 causal 2x2x2 taps stacked on sublanes."""
            taps = []
            for kt in (0, 1):
                for kh in (0, 1):
                    for kw in (0, 1):
                        # tap value at flat position m is a[m - d] (or 0 if causal-invalid)
                        d = (1 - kt) * HW + (1 - kh) * W + (1 - kw)
                        tap = pltpu.roll(a, d, axis=1) if d else a
                        conds = []
                        if kt == 0:
                            conds.append(t_ok)
                        if kh == 0:
                            conds.append(h_ok)
                        if kw == 0:
                            conds.append(w_ok)
                        if conds:
                            valid = functools.reduce(jnp.logical_and, conds)
                            tap = jnp.where(valid, tap, 0.0)
                        taps.append(tap)
            return jnp.concatenate(taps, axis=0).astype(jnp.bfloat16)

        # ---- conv1: elu -> causal conv (single K=8C matmul) -> elu ----------
        z = jnp.dot(w1_ref[...], im2col(_elu(x)),
                    preferred_element_type=jnp.float32) + b1_ref[...]
        z = _elu(z)                                             # (C, L) f32

        # ---- conv2 (C -> 2C, value+gate fused in one matmul) + gate ---------
        u = jnp.dot(w2_ref[...], im2col(z),
                    preferred_element_type=jnp.float32) + b2_ref[...]
        val, gate = u[:C, :], u[C:, :]
        sig = pl.reciprocal(1.0 + jnp.exp(-gate), approx=True)  # EUP exp + EUP rcp
        o_ref[...] = (x + val * sig).astype(o_ref.dtype)

    return kernel


def residual_block(x, w1, b1, w2, b2, *, batch_block=None):
    """Fused ResidualBlock forward.

    x : (N, T, H, W, C) f32 activations (NTHWC).
    w1: (2, 2, 2, C, C)  conv1 weights (DHWIO), b1: (C,)
    w2: (2, 2, 2, C, 2C) conv2 weights (DHWIO), b2: (2C,)
    batch_block: batch items per grid step. Default folds the whole batch into
      a single block (single-TC v5e/v6e); use 1 on v7x so the "parallel" grid
      axis can be split across its two TensorCores.
    """
    N, T, H, W, C = x.shape
    M = T * H * W
    if batch_block is None:
        batch_block = N
    assert N % batch_block == 0, (N, batch_block)
    G = N // batch_block
    L = batch_block * M          # lane-dense when a multiple of 128 (true here)

    # ---- pure layout glue (XLA side) -------------------------------------
    # activations -> (G, C, L): channels-first, spatially flattened
    xcf = x.reshape(G, batch_block, T, H, W, C)
    xcf = xcf.transpose(0, 5, 1, 2, 3, 4).reshape(G, C, L)
    # weights -> transposed im2col form (Cout, 8C), bf16 MXU operands
    w1t = w1.reshape(8 * C, C).T.astype(jnp.bfloat16)           # (C,  8C)
    w2t = w2.reshape(8 * C, 2 * C).T.astype(jnp.bfloat16)       # (2C, 8C)
    b1c = b1.reshape(C, 1).astype(jnp.float32)
    b2c = b2.reshape(2 * C, 1).astype(jnp.float32)

    act_spec = pl.BlockSpec((None, C, L), lambda g: (g, 0, 0))
    full2d = lambda shape: pl.BlockSpec(shape, lambda g: (0, 0))

    out = pl.pallas_call(
        _make_kernel(T, H, W, C, L),
        out_shape=jax.ShapeDtypeStruct((G, C, L), x.dtype),
        grid_spec=pltpu.PrefetchScalarGridSpec(
            num_scalar_prefetch=0,
            grid=(G,),
            in_specs=[act_spec,
                      full2d((C, 8 * C)), full2d((C, 1)),
                      full2d((2 * C, 8 * C)), full2d((2 * C, 1))],
            out_specs=act_spec,
        ),
        compiler_params=pltpu.CompilerParams(
            dimension_semantics=("parallel",)),
    )(xcf, w1t, b1c, w2t, b2c)

    # (G, C, L) -> (N, T, H, W, C)
    out = out.reshape(G, C, batch_block, T, H, W).transpose(0, 2, 3, 4, 5, 1)
    return out.reshape(N, T, H, W, C)


def residual_block_ref(x, w1, b1, w2, b2):
    """Pure-JAX reference mirroring the PyTorch module (NTHWC / DHWIO)."""
    N, T, H, W, C = x.shape

    def conv(v, w, b):
        out = jax.lax.conv_general_dilated(
            v, w, window_strides=(1, 1, 1),
            padding=((1, 1), (1, 1), (1, 1)),
            dimension_numbers=("NDHWC", "DHWIO", "NDHWC"),
            precision=jax.lax.Precision.HIGHEST)
        return out[:, :T, :H, :W, :] + b

    out = _elu(conv(_elu(x), w1, b1))
    u = conv(out, w2, b2)
    val, gate = u[..., :C], u[..., C:]
    return x + val * (1.0 / (1.0 + jnp.exp(-gate)))


if __name__ == "__main__":
    N, C, T, H, W = 2, 8, 4, 8, 8   # torch x shape (N, C, T, H, W) = (2, 8, 4, 8, 8)

    key = jax.random.PRNGKey(0)
    kx, k1, k2, k3, k4 = jax.random.split(key, 5)
    x = jax.random.normal(kx, (N, T, H, W, C), jnp.float32)

    # Deterministic init mimicking PyTorch Conv3d default (uniform +- 1/sqrt(fan_in)).
    fan_in = C * 2 * 2 * 2
    bound = 1.0 / math.sqrt(fan_in)
    w1 = jax.random.uniform(k1, (2, 2, 2, C, C), jnp.float32, -bound, bound)
    b1 = jax.random.uniform(k2, (C,), jnp.float32, -bound, bound)
    w2 = jax.random.uniform(k3, (2, 2, 2, C, 2 * C), jnp.float32, -bound, bound)
    b2 = jax.random.uniform(k4, (2 * C,), jnp.float32, -bound, bound)

    ref = residual_block_ref(x, w1, b1, w2, b2)

    # default: whole batch folded into one block (single-TC v5e/v6e friendly)
    out = jax.block_until_ready(residual_block(x, w1, b1, w2, b2))
    # per-batch "parallel" grid (v7x megacore path) - same kernel, different tiling
    out_pb = jax.block_until_ready(residual_block(x, w1, b1, w2, b2, batch_block=1))

    assert out.shape == x.shape, (out.shape, x.shape)
    for name, o in (("folded", out), ("per-batch", out_pb)):
        # bf16 MXU operands with f32 accumulation => slightly looser tolerance
        # than the previous all-f32 kernel (ref uses Precision.HIGHEST).
        if not jnp.allclose(o, ref, atol=2e-2, rtol=2e-2):
            err = float(jnp.max(jnp.abs(o - ref)))
            raise AssertionError(f"{name}: kernel/reference mismatch, max abs err = {err}")

    print("KERNEL_OK")
</pallas_src>

<mosaic_0001>
module attributes {stable_mosaic.version = 11 : i64} {
  func.func @kernel(%arg0: i32, %arg1: memref<1x8x512xf32, #tpu.memory_space<vmem>>, %arg2: memref<8x64xbf16, #tpu.memory_space<vmem>>, %arg3: memref<8x1xf32, #tpu.memory_space<vmem>>, %arg4: memref<16x64xbf16, #tpu.memory_space<vmem>>, %arg5: memref<16x1xf32, #tpu.memory_space<vmem>>, %arg6: memref<1x8x512xf32, #tpu.memory_space<vmem>>) attributes {dimension_semantics = [#tpu.dimension_semantics<parallel>], iteration_bounds = array<i64: 1>, scalar_prefetch = 0 : i64, scratch_operands = 0 : i64, tpu.core_type = #tpu.core_type<tc>, window_params = [{transform_indices = @transform_0, window_bounds = array<i64: 1, 8, 512>}, {pipeline_mode = #tpu.pipeline_mode<synchronous>, transform_indices = @transform_1, window_bounds = array<i64: 8, 64>}, {pipeline_mode = #tpu.pipeline_mode<synchronous>, transform_indices = @transform_2, window_bounds = array<i64: 8, 1>}, {pipeline_mode = #tpu.pipeline_mode<synchronous>, transform_indices = @transform_3, window_bounds = array<i64: 16, 64>}, {pipeline_mode = #tpu.pipeline_mode<synchronous>, transform_indices = @transform_4, window_bounds = array<i64: 16, 1>}, {transform_indices = @transform_5, window_bounds = array<i64: 1, 8, 512>}]} {
    %c0 = arith.constant 0 : index
    %c0_0 = arith.constant 0 : index
    %c0_1 = arith.constant 0 : index
    %0 = vector.load %arg1[%c0, %c0_0, %c0_1] : memref<1x8x512xf32, #tpu.memory_space<vmem>>, vector<1x8x512xf32>
    %1 = vector.shape_cast %0 : vector<1x8x512xf32> to vector<8x512xf32>
    %2 = tpu.iota {dimensions = array<i32: 1>} : vector<1x512xi32>
    %c256_i32 = arith.constant 256 : i32
    %c0_i32 = arith.constant 0 : i32
    %3 = arith.cmpi eq, %c256_i32, %c0_i32 : i32
    %c1_i32 = arith.constant 1 : i32
    %4 = arith.select %3, %c1_i32, %c256_i32 : i32
    %5 = vector.broadcast %4 : i32 to vector<1x512xi32>
    %6 = arith.remsi %2, %5 : vector<1x512xi32>
    %c0_i32_2 = arith.constant 0 : i32
    %7 = vector.broadcast %c0_i32_2 : i32 to vector<1x512xi32>
    %8 = arith.cmpi ne, %6, %7 : vector<1x512xi32>
    %c0_i32_3 = arith.constant 0 : i32
    %9 = vector.broadcast %c0_i32_3 : i32 to vector<1x512xi32>
    %10 = arith.cmpi slt, %6, %9 : vector<1x512xi32>
    %c0_i32_4 = arith.constant 0 : i32
    %11 = arith.cmpi slt, %4, %c0_i32_4 : i32
    %12 = vector.broadcast %11 : i1 to vector<1x512xi1>
    %13 = vector.broadcast %12 : vector<1x512xi1> to vector<1x512xi1>
    %14 = arith.xori %10, %13 : vector<1x512xi1>
    %15 = arith.andi %14, %8 : vector<1x512xi1>
    %16 = vector.broadcast %4 : i32 to vector<1x512xi32>
    %17 = arith.addi %6, %16 : vector<1x512xi32>
    %18 = arith.select %15, %17, %6 : vector<1x512xi1>, vector<1x512xi32>
    %c64_i32 = arith.constant 64 : i32
    %19 = vector.broadcast %c64_i32 : i32 to vector<1x512xi32>
    %20 = arith.cmpi sge, %18, %19 : vector<1x512xi32>
    %c64_i32_5 = arith.constant 64 : i32
    %c0_i32_6 = arith.constant 0 : i32
    %21 = arith.cmpi eq, %c64_i32_5, %c0_i32_6 : i32
    %c1_i32_7 = arith.constant 1 : i32
    %22 = arith.select %21, %c1_i32_7, %c64_i32_5 : i32
    %23 = vector.broadcast %22 : i32 to vector<1x512xi32>
    %24 = arith.remsi %2, %23 : vector<1x512xi32>
    %c0_i32_8 = arith.constant 0 : i32
    %25 = vector.broadcast %c0_i32_8 : i32 to vector<1x512xi32>
    %26 = arith.cmpi ne, %24, %25 : vector<1x512xi32>
    %c0_i32_9 = arith.constant 0 : i32
    %27 = vector.broadcast %c0_i32_9 : i32 to vector<1x512xi32>
    %28 = arith.cmpi slt, %24, %27 : vector<1x512xi32>
    %c0_i32_10 = arith.constant 0 : i32
    %29 = arith.cmpi slt, %22, %c0_i32_10 : i32
    %30 = vector.broadcast %29 : i1 to vector<1x512xi1>
    %31 = vector.broadcast %30 : vector<1x512xi1> to vector<1x512xi1>
    %32 = arith.xori %28, %31 : vector<1x512xi1>
    %33 = arith.andi %32, %26 : vector<1x512xi1>
    %34 = vector.broadcast %22 : i32 to vector<1x512xi32>
    %35 = arith.addi %24, %34 : vector<1x512xi32>
    %36 = arith.select %33, %35, %24 : vector<1x512xi1>, vector<1x512xi32>
    %c8_i32 = arith.constant 8 : i32
    %37 = vector.broadcast %c8_i32 : i32 to vector<1x512xi32>
    %38 = arith.cmpi sge, %36, %37 : vector<1x512xi32>
    %c8_i32_11 = arith.constant 8 : i32
    %c0_i32_12 = arith.constant 0 : i32
    %39 = arith.cmpi eq, %c8_i32_11, %c0_i32_12 : i32
    %c1_i32_13 = arith.constant 1 : i32
    %40 = arith.select %39, %c1_i32_13, %c8_i32_11 : i32
    %41 = vector.broadcast %40 : i32 to vector<1x512xi32>
    %42 = arith.remsi %2, %41 : vector<1x512xi32>
    %c0_i32_14 = arith.constant 0 : i32
    %43 = vector.broadcast %c0_i32_14 : i32 to vector<1x512xi32>
    %44 = arith.cmpi ne, %42, %43 : vector<1x512xi32>
    %c0_i32_15 = arith.constant 0 : i32
    %45 = vector.broadcast %c0_i32_15 : i32 to vector<1x512xi32>
    %46 = arith.cmpi slt, %42, %45 : vector<1x512xi32>
    %c0_i32_16 = arith.constant 0 : i32
    %47 = arith.cmpi slt, %40, %c0_i32_16 : i32
    %48 = vector.broadcast %47 : i1 to vector<1x512xi1>
    %49 = vector.broadcast %48 : vector<1x512xi1> to vector<1x512xi1>
    %50 = arith.xori %46, %49 : vector<1x512xi1>
    %51 = arith.andi %50, %44 : vector<1x512xi1>
    %52 = vector.broadcast %40 : i32 to vector<1x512xi32>
    %53 = arith.addi %42, %52 : vector<1x512xi32>
    %54 = arith.select %51, %53, %42 : vector<1x512xi1>, vector<1x512xi32>
    %c1_i32_17 = arith.constant 1 : i32
    %55 = vector.broadcast %c1_i32_17 : i32 to vector<1x512xi32>
    %56 = arith.cmpi sge, %54, %55 : vector<1x512xi32>
    %c0_18 = arith.constant 0 : index
    %c0_19 = arith.constant 0 : index
    %57 = vector.load %arg2[%c0_18, %c0_19] : memref<8x64xbf16, #tpu.memory_space<vmem>>, vector<8x64xbf16>
    %cst = arith.constant 0.000000e+00 : f32
    %58 = vector.broadcast %cst : f32 to vector<8x512xf32>
    %59 = arith.cmpf ogt, %1, %58 : vector<8x512xf32>
    %cst_20 = arith.constant 0.000000e+00 : f32
    %60 = vector.broadcast %cst_20 : f32 to vector<8x512xf32>
    %61 = arith.minimumf %1, %60 : vector<8x512xf32>
    %62 = math.exp %61 : vector<8x512xf32>
    %cst_21 = arith.constant 1.000000e+00 : f32
    %63 = vector.broadcast %cst_21 : f32 to vector<8x512xf32>
    %64 = arith.subf %62, %63 : vector<8x512xf32>
    %65 = arith.select %59, %1, %64 : vector<8x512xi1>, vector<8x512xf32>
    %c73_i32 = arith.constant 73 : i32
    %66 = tpu.dynamic_rotate %65 by %c73_i32 dim 1 : vector<8x512xf32>, i32 -> vector<8x512xf32>
    %67 = arith.andi %20, %38 : vector<1x512xi1>
    %68 = arith.andi %67, %56 : vector<1x512xi1>
    %cst_22 = arith.constant 0.000000e+00 : f32
    %69 = vector.shape_cast %68 : vector<1x512xi1> to vector<1x512xi1>
    %70 = vector.broadcast %69 : vector<1x512xi1> to vector<8x512xi1>
    %71 = vector.broadcast %cst_22 : f32 to vector<8x512xf32>
    %72 = arith.select %70, %66, %71 : vector<8x512xi1>, vector<8x512xf32>
    %c72_i32 = arith.constant 72 : i32
    %73 = tpu.dynamic_rotate %65 by %c72_i32 dim 1 : vector<8x512xf32>, i32 -> vector<8x512xf32>
    %74 = arith.andi %20, %38 : vector<1x512xi1>
    %cst_23 = arith.constant 0.000000e+00 : f32
    %75 = vector.shape_cast %74 : vector<1x512xi1> to vector<1x512xi1>
    %76 = vector.broadcast %75 : vector<1x512xi1> to vector<8x512xi1>
    %77 = vector.broadcast %cst_23 : f32 to vector<8x512xf32>
    %78 = arith.select %76, %73, %77 : vector<8x512xi1>, vector<8x512xf32>
    %c65_i32 = arith.constant 65 : i32
    %79 = tpu.dynamic_rotate %65 by %c65_i32 dim 1 : vector<8x512xf32>, i32 -> vector<8x512xf32>
    %80 = arith.andi %20, %56 : vector<1x512xi1>
    %cst_24 = arith.constant 0.000000e+00 : f32
    %81 = vector.shape_cast %80 : vector<1x512xi1> to vector<1x512xi1>
    %82 = vector.broadcast %81 : vector<1x512xi1> to vector<8x512xi1>
    %83 = vector.broadcast %cst_24 : f32 to vector<8x512xf32>
    %84 = arith.select %82, %79, %83 : vector<8x512xi1>, vector<8x512xf32>
    %c64_i32_25 = arith.constant 64 : i32
    %85 = tpu.dynamic_rotate %65 by %c64_i32_25 dim 1 : vector<8x512xf32>, i32 -> vector<8x512xf32>
    %cst_26 = arith.constant 0.000000e+00 : f32
    %86 = vector.shape_cast %20 : vector<1x512xi1> to vector<1x512xi1>
    %87 = vector.broadcast %86 : vector<1x512xi1> to vector<8x512xi1>
    %88 = vector.broadcast %cst_26 : f32 to vector<8x512xf32>
    %89 = arith.select %87, %85, %88 : vector<8x512xi1>, vector<8x512xf32>
    %c9_i32 = arith.constant 9 : i32
    %90 = tpu.dynamic_rotate %65 by %c9_i32 dim 1 : vector<8x512xf32>, i32 -> vector<8x512xf32>
    %91 = arith.andi %38, %56 : vector<1x512xi1>
    %cst_27 = arith.constant 0.000000e+00 : f32
    %92 = vector.shape_cast %91 : vector<1x512xi1> to vector<1x512xi1>
    %93 = vector.broadcast %92 : vector<1x512xi1> to vector<8x512xi1>
    %94 = vector.broadcast %cst_27 : f32 to vector<8x512xf32>
    %95 = arith.select %93, %90, %94 : vector<8x512xi1>, vector<8x512xf32>
    %c8_i32_28 = arith.constant 8 : i32
    %96 = tpu.dynamic_rotate %65 by %c8_i32_28 dim 1 : vector<8x512xf32>, i32 -> vector<8x512xf32>
    %cst_29 = arith.constant 0.000000e+00 : f32
    %97 = vector.shape_cast %38 : vector<1x512xi1> to vector<1x512xi1>
    %98 = vector.broadcast %97 : vector<1x512xi1> to vector<8x512xi1>
    %99 = vector.broadcast %cst_29 : f32 to vector<8x512xf32>
    %100 = arith.select %98, %96, %99 : vector<8x512xi1>, vector<8x512xf32>
    %c1_i32_30 = arith.constant 1 : i32
    %101 = tpu.dynamic_rotate %65 by %c1_i32_30 dim 1 : vector<8x512xf32>, i32 -> vector<8x512xf32>
    %cst_31 = arith.constant 0.000000e+00 : f32
    %102 = vector.shape_cast %56 : vector<1x512xi1> to vector<1x512xi1>
    %103 = vector.broadcast %102 : vector<1x512xi1> to vector<8x512xi1>
    %104 = vector.broadcast %cst_31 : f32 to vector<8x512xf32>
    %105 = arith.select %103, %101, %104 : vector<8x512xi1>, vector<8x512xf32>
    %106 = tpu.concatenate %72, %78, %84, %89, %95, %100, %105, %65 in 0 : vector<8x512xf32>, vector<8x512xf32>, vector<8x512xf32>, vector<8x512xf32>, vector<8x512xf32>, vector<8x512xf32>, vector<8x512xf32>, vector<8x512xf32> -> vector<64x512xf32>
    %107 = arith.truncf %106 : vector<64x512xf32> to vector<64x512xbf16>
    %cst_32 = arith.constant dense<0.000000e+00> : vector<8x512xf32>
    %108 = tpu.matmul %57, %107, %cst_32 {dimension_numbers = #tpu.dot_dimension_numbers<[1], [0], [0], [1], [0, 0, 1, 1], [], []>} : vector<8x64xbf16>, vector<64x512xbf16>, vector<8x512xf32> -> vector<8x512xf32>
    %c0_33 = arith.constant 0 : index
    %c0_34 = arith.constant 0 : index
    %109 = vector.load %arg3[%c0_33, %c0_34] : memref<8x1xf32, #tpu.memory_space<vmem>>, vector<8x1xf32>
    %110 = vector.broadcast %109 : vector<8x1xf32> to vector<8x512xf32>
    %111 = arith.addf %108, %110 : vector<8x512xf32>
    %cst_35 = arith.constant 0.000000e+00 : f32
    %112 = vector.broadcast %cst_35 : f32 to vector<8x512xf32>
    %113 = arith.cmpf ogt, %111, %112 : vector<8x512xf32>
    %cst_36 = arith.constant 0.000000e+00 : f32
    %114 = vector.broadcast %cst_36 : f32 to vector<8x512xf32>
    %115 = arith.minimumf %111, %114 : vector<8x512xf32>
    %116 = math.exp %115 : vector<8x512xf32>
    %cst_37 = arith.constant 1.000000e+00 : f32
    %117 = vector.broadcast %cst_37 : f32 to vector<8x512xf32>
    %118 = arith.subf %116, %117 : vector<8x512xf32>
    %119 = arith.select %113, %111, %118 : vector<8x512xi1>, vector<8x512xf32>
    %c0_38 = arith.constant 0 : index
    %c0_39 = arith.constant 0 : index
    %120 = vector.load %arg4[%c0_38, %c0_39] : memref<16x64xbf16, #tpu.memory_space<vmem>>, vector<16x64xbf16>
    %c73_i32_40 = arith.constant 73 : i32
    %121 = tpu.dynamic_rotate %119 by %c73_i32_40 dim 1 : vector<8x512xf32>, i32 -> vector<8x512xf32>
    %122 = arith.andi %20, %38 : vector<1x512xi1>
    %123 = arith.andi %122, %56 : vector<1x512xi1>
    %cst_41 = arith.constant 0.000000e+00 : f32
    %124 = vector.shape_cast %123 : vector<1x512xi1> to vector<1x512xi1>
    %125 = vector.broadcast %124 : vector<1x512xi1> to vector<8x512xi1>
    %126 = vector.broadcast %cst_41 : f32 to vector<8x512xf32>
    %127 = arith.select %125, %121, %126 : vector<8x512xi1>, vector<8x512xf32>
    %c72_i32_42 = arith.constant 72 : i32
    %128 = tpu.dynamic_rotate %119 by %c72_i32_42 dim 1 : vector<8x512xf32>, i32 -> vector<8x512xf32>
    %129 = arith.andi %20, %38 : vector<1x512xi1>
    %cst_43 = arith.constant 0.000000e+00 : f32
    %130 = vector.shape_cast %129 : vector<1x512xi1> to vector<1x512xi1>
    %131 = vector.broadcast %130 : vector<1x512xi1> to vector<8x512xi1>
    %132 = vector.broadcast %cst_43 : f32 to vector<8x512xf32>
    %133 = arith.select %131, %128, %132 : vector<8x512xi1>, vector<8x512xf32>
    %c65_i32_44 = arith.constant 65 : i32
    %134 = tpu.dynamic_rotate %119 by %c65_i32_44 dim 1 : vector<8x512xf32>, i32 -> vector<8x512xf32>
    %135 = arith.andi %20, %56 : vector<1x512xi1>
    %cst_45 = arith.constant 0.000000e+00 : f32
    %136 = vector.shape_cast %135 : vector<1x512xi1> to vector<1x512xi1>
    %137 = vector.broadcast %136 : vector<1x512xi1> to vector<8x512xi1>
    %138 = vector.broadcast %cst_45 : f32 to vector<8x512xf32>
    %139 = arith.select %137, %134, %138 : vector<8x512xi1>, vector<8x512xf32>
    %c64_i32_46 = arith.constant 64 : i32
    %140 = tpu.dynamic_rotate %119 by %c64_i32_46 dim 1 : vector<8x512xf32>, i32 -> vector<8x512xf32>
    %cst_47 = arith.constant 0.000000e+00 : f32
    %141 = vector.shape_cast %20 : vector<1x512xi1> to vector<1x512xi1>
    %142 = vector.broadcast %141 : vector<1x512xi1> to vector<8x512xi1>
    %143 = vector.broadcast %cst_47 : f32 to vector<8x512xf32>
    %144 = arith.select %142, %140, %143 : vector<8x512xi1>, vector<8x512xf32>
    %c9_i32_48 = arith.constant 9 : i32
    %145 = tpu.dynamic_rotate %119 by %c9_i32_48 dim 1 : vector<8x512xf32>, i32 -> vector<8x512xf32>
    %146 = arith.andi %38, %56 : vector<1x512xi1>
    %cst_49 = arith.constant 0.000000e+00 : f32
    %147 = vector.shape_cast %146 : vector<1x512xi1> to vector<1x512xi1>
    %148 = vector.broadcast %147 : vector<1x512xi1> to vector<8x512xi1>
    %149 = vector.broadcast %cst_49 : f32 to vector<8x512xf32>
    %150 = arith.select %148, %145, %149 : vector<8x512xi1>, vector<8x512xf32>
    %c8_i32_50 = arith.constant 8 : i32
    %151 = tpu.dynamic_rotate %119 by %c8_i32_50 dim 1 : vector<8x512xf32>, i32 -> vector<8x512xf32>
    %cst_51 = arith.constant 0.000000e+00 : f32
    %152 = vector.shape_cast %38 : vector<1x512xi1> to vector<1x512xi1>
    %153 = vector.broadcast %152 : vector<1x512xi1> to vector<8x512xi1>
    %154 = vector.broadcast %cst_51 : f32 to vector<8x512xf32>
    %155 = arith.select %153, %151, %154 : vector<8x512xi1>, vector<8x512xf32>
    %c1_i32_52 = arith.constant 1 : i32
    %156 = tpu.dynamic_rotate %119 by %c1_i32_52 dim 1 : vector<8x512xf32>, i32 -> vector<8x512xf32>
    %cst_53 = arith.constant 0.000000e+00 : f32
    %157 = vector.shape_cast %56 : vector<1x512xi1> to vector<1x512xi1>
    %158 = vector.broadcast %157 : vector<1x512xi1> to vector<8x512xi1>
    %159 = vector.broadcast %cst_53 : f32 to vector<8x512xf32>
    %160 = arith.select %158, %156, %159 : vector<8x512xi1>, vector<8x512xf32>
    %161 = tpu.concatenate %127, %133, %139, %144, %150, %155, %160, %119 in 0 : vector<8x512xf32>, vector<8x512xf32>, vector<8x512xf32>, vector<8x512xf32>, vector<8x512xf32>, vector<8x512xf32>, vector<8x512xf32>, vector<8x512xf32> -> vector<64x512xf32>
    %162 = arith.truncf %161 : vector<64x512xf32> to vector<64x512xbf16>
    %cst_54 = arith.constant dense<0.000000e+00> : vector<16x512xf32>
    %163 = tpu.matmul %120, %162, %cst_54 {dimension_numbers = #tpu.dot_dimension_numbers<[1], [0], [0], [1], [0, 0, 1, 1], [], []>} : vector<16x64xbf16>, vector<64x512xbf16>, vector<16x512xf32> -> vector<16x512xf32>
    %c0_55 = arith.constant 0 : index
    %c0_56 = arith.constant 0 : index
    %164 = vector.load %arg5[%c0_55, %c0_56] : memref<16x1xf32, #tpu.memory_space<vmem>>, vector<16x1xf32>
    %165 = vector.broadcast %164 : vector<16x1xf32> to vector<16x512xf32>
    %166 = arith.addf %163, %165 : vector<16x512xf32>
    %167 = vector.extract_strided_slice %166 {offsets = [0, 0], sizes = [8, 512], strides = [1, 1]} : vector<16x512xf32> to vector<8x512xf32>
    %168 = vector.extract_strided_slice %166 {offsets = [8, 0], sizes = [8, 512], strides = [1, 1]} : vector<16x512xf32> to vector<8x512xf32>
    %cst_57 = arith.constant 0.000000e+00 : f32
    %169 = vector.broadcast %cst_57 : f32 to vector<8x512xf32>
    %170 = arith.subf %169, %168 : vector<8x512xf32>
    %171 = math.exp %170 : vector<8x512xf32>
    %cst_58 = arith.constant 1.000000e+00 : f32
    %172 = vector.broadcast %cst_58 : f32 to vector<8x512xf32>
    %173 = arith.addf %172, %171 : vector<8x512xf32>
    %174 = tpu.reciprocal %173 {approx = true} : vector<8x512xf32> -> vector<8x512xf32>
    %175 = arith.mulf %167, %174 : vector<8x512xf32>
    %176 = arith.addf %1, %175 : vector<8x512xf32>
    %c0_59 = arith.constant 0 : index
    %c0_60 = arith.constant 0 : index
    %c0_61 = arith.constant 0 : index
    %177 = vector.load %arg6[%c0_59, %c0_60, %c0_61] : memref<1x8x512xf32, #tpu.memory_space<vmem>>, vector<1x8x512xf32>
    %178 = vector.shape_cast %177 : vector<1x8x512xf32> to vector<8x512xf32>
    %179 = vector.shape_cast %176 : vector<8x512xf32> to vector<1x8x512xf32>
    tpu.vector_store %arg6[%c0_59, %c0_60, %c0_61], %179 {strides = array<i32>} : memref<1x8x512xf32, #tpu.memory_space<vmem>>, vector<1x8x512xf32>,
    return
  }
  func.func @transform_0(%arg0: i32) -> (i32, i32, i32) {
    %c0_i32 = arith.constant 0 : i32
    %c0_i32_0 = arith.constant 0 : i32
    %c0_i32_1 = arith.constant 0 : i32
    return %arg0, %c0_i32, %c0_i32_0 : i32, i32, i32
  }
  func.func @transform_1(%arg0: i32) -> (i32, i32) {
    %c0_i32 = arith.constant 0 : i32
    %c0_i32_0 = arith.constant 0 : i32
    %c0_i32_1 = arith.constant 0 : i32
    return %c0_i32, %c0_i32_0 : i32, i32
  }
  func.func @transform_2(%arg0: i32) -> (i32, i32) {
    %c0_i32 = arith.constant 0 : i32
    %c0_i32_0 = arith.constant 0 : i32
    %c0_i32_1 = arith.constant 0 : i32
    return %c0_i32, %c0_i32_0 : i32, i32
  }
  func.func @transform_3(%arg0: i32) -> (i32, i32) {
    %c0_i32 = arith.constant 0 : i32
    %c0_i32_0 = arith.constant 0 : i32
    %c0_i32_1 = arith.constant 0 : i32
    return %c0_i32, %c0_i32_0 : i32, i32
  }
  func.func @transform_4(%arg0: i32) -> (i32, i32) {
    %c0_i32 = arith.constant 0 : i32
    %c0_i32_0 = arith.constant 0 : i32
    %c0_i32_1 = arith.constant 0 : i32
    return %c0_i32, %c0_i32_0 : i32, i32
  }
  func.func @transform_5(%arg0: i32) -> (i32, i32, i32) {
    %c0_i32 = arith.constant 0 : i32
    %c0_i32_0 = arith.constant 0 : i32
    %c0_i32_1 = arith.constant 0 : i32
    return %arg0, %c0_i32, %c0_i32_0 : i32, i32, i32
  }
}

</mosaic_0001>

<llo_original>
// kernel: tpu_custom_call.1
$region0: #{tpu_custom_call.1}
  #allocation0 [shape = 'u32[]', space=smem, size = 0x4, offset = 0x4, fixed_abs, tag = 'smem constant byte address 0x4 - core index']
  #allocation1 [shape = 'u32[144,128]{1,0:T(1,128)}', space=vmem, size = 0x12000, scoped, tag = 'internal scratch']
  %s0 = inlined_call_operand.hbm [shape: f32[1,8,512], index: 0, kind: input, shape index: {}]
  %s1 = inlined_call_operand.vmem [shape: bf16[8,64], index: 1, kind: input, shape index: {}]
  %s2 = inlined_call_operand.vmem [shape: f32[8,1], index: 2, kind: input, shape index: {}]
  %s3 = inlined_call_operand.vmem [shape: bf16[16,64], index: 3, kind: input, shape index: {}]
  %s4 = inlined_call_operand.vmem [shape: f32[16,1], index: 4, kind: input, shape index: {}]
  %s5 = inlined_call_operand.hbm [shape: f32[1,8,512], index: 5, kind: output, shape index: {}]
  %s6 = sld [smem:[#allocation0]]
  $region34: #{tpu_custom_call.1} parent=0
    _
  %s8 = ssub.s32 1, %s6
  %s9 = scalar_select 0, %s8, %s6
  $region1: #{tpu_custom_call.1} parent=0
    #allocation2 [shape = 'u8[16384]{0}', space=vmem, size = 0x4000, scoped, tag = 'input window, operand 0, single buffered']
    #allocation3 [shape = 's32[1]{0}', space=sflag, size = 0x4, scoped, tag = 'scoped memory for tpu_custom_call.1']
    #allocation4 [shape = 's32[1]{0}', space=sflag, size = 0x4, scoped, tag = 'scoped memory for tpu_custom_call.1']
    #allocation5 [shape = 'u8[16384]{0}', space=vmem, size = 0x4000, scoped, tag = 'output window, operand 0, single buffered']
    %10 = vsyncpa [#allocation3], 0
    %11 = vsyncpa [#allocation4], 0
    // Predicated region
    $region2: #{tpu_custom_call.1} parent=1 // pred_check
      _
    $region3: #{tpu_custom_call.1} parent=1 // pred_check_branch
      %13 = sbr.rel (0) target = $region5
    $region4: #{tpu_custom_call.1} parent=1 // pred_region
      %s15 = ssub.s32 512, 512
      %16 = vsyncadd [#allocation3], %s15
      %s18 = sshll.u32 [#allocation2], 4
      %s19 = int_to_ptr.vmem [resolvable:$true] %s18
      %21 = dma.hbm_to_vmem [thread:$0]  %s0, 512, %s19, [#allocation3]
    $region5: #{tpu_custom_call.1} parent=1 // pred_fallthru
      _
    // Predicated region
    $region6: #{tpu_custom_call.1} parent=1 // pred_check
      _
    $region7: #{tpu_custom_call.1} parent=1 // pred_check_branch
      %23 = sbr.rel (0) target = $region9
    $region8: #{tpu_custom_call.1} parent=1 // pred_region
      _
    $region9: #{tpu_custom_call.1} parent=1 // pred_fallthru
      _
    // Predicated region
    $region10: #{tpu_custom_call.1} parent=1 // pred_check
      _
    $region11: #{tpu_custom_call.1} parent=1 // pred_check_branch
      %25 = sbr.rel (0) target = $region13
    $region12: #{tpu_custom_call.1} parent=1 // pred_region
      _
    $region13: #{tpu_custom_call.1} parent=1 // pred_fallthru
      _
    // Predicated region
    $region14: #{tpu_custom_call.1} parent=1 // pred_check
      _
    $region15: #{tpu_custom_call.1} parent=1 // pred_check_branch
      %27 = sbr.rel (0) target = $region17
    $region16: #{tpu_custom_call.1} parent=1 // pred_region
      _
    $region17: #{tpu_custom_call.1} parent=1 // pred_fallthru
      _
    // Predicated region
    $region18: #{tpu_custom_call.1} parent=1 // pred_check
      _
    $region19: #{tpu_custom_call.1} parent=1 // pred_check_branch
      %29 = sbr.rel (0) target = $region21
    $region20: #{tpu_custom_call.1} parent=1 // pred_region
      _
    $region21: #{tpu_custom_call.1} parent=1 // pred_fallthru
      _
    // Predicated region
    $region22: #{tpu_custom_call.1} parent=1 // pred_check
      _
    $region23: #{tpu_custom_call.1} parent=1 // pred_check_branch
      %31 = sbr.rel (0) target = $region25
    $region24: #{tpu_custom_call.1} parent=1 // pred_region
      %32 = dma.done [#allocation3], 512
    $region25: #{tpu_custom_call.1} parent=1 // pred_fallthru
      _
    %v34 = vld [vmem:[#allocation2] sm:$0xff]
    %v35 = vld [vmem:[#allocation2 + $0x8] sm:$0xff]
    %v36 = vld [vmem:[#allocation2 + $0x10] sm:$0xff]
    %v37 = vld [vmem:[#allocation2 + $0x18] sm:$0xff]
    %v38 = vlaneseq
    %v39 = vand.u32 %v38, 127
    %v40 = vadd.s32 %v39, 128
    %v41 = vadd.s32 %v39, 256
    %v42 = vadd.s32 %v39, 384
    %vm43 = vcmp.lt.s32.totalorder %v39, 0
    %v44 = vsub.s32 0, %v39
    %v45 = vsel %vm43, %v44, %v39
    %v46 = vshrl.u32 %v45, 8
    %v47 = vand.u32 %v45, 255
    %v48 = vsub.s32 0, %v47
    %v49 = vsel %vm43, %v48, %v47
    %vm50 = vcmp.lt.s32.totalorder %v40, 0
    %v51 = vsub.s32 0, %v40
    %v52 = vsel %vm50, %v51, %v40
    %v53 = vshrl.u32 %v52, 8
    %v54 = vand.u32 %v52, 255
    %v55 = vsub.s32 0, %v54
    %v56 = vsel %vm50, %v55, %v54
    %vm57 = vcmp.lt.s32.totalorder %v41, 0
    %v58 = vsub.s32 0, %v41
    %v59 = vsel %vm57, %v58, %v41
    %v60 = vshrl.u32 %v59, 8
    %v61 = vand.u32 %v59, 255
    %v62 = vsub.s32 0, %v61
    %v63 = vsel %vm57, %v62, %v61
    %vm64 = vcmp.lt.s32.totalorder %v42, 0
    %v65 = vsub.s32 0, %v42
    %v66 = vsel %vm64, %v65, %v42
    %v67 = vshrl.u32 %v66, 8
    %v68 = vand.u32 %v66, 255
    %v69 = vsub.s32 0, %v68
    %v70 = vsel %vm64, %v69, %v68
    %vm71 = vcmp.ne.s32.totalorder %v49, 0
    %vm72 = vcmp.ne.s32.totalorder %v56, 0
    %vm73 = vcmp.ne.s32.totalorder %v63, 0
    %vm74 = vcmp.ne.s32.totalorder %v70, 0
    %vm75 = vcmp.lt.s32.totalorder %v49, 0
    %vm76 = vcmp.lt.s32.totalorder %v56, 0
    %vm77 = vcmp.lt.s32.totalorder %v63, 0
    %vm78 = vcmp.lt.s32.totalorder %v70, 0
    %vm79 = vmand %vm75, %vm71
    %vm80 = vmand %vm76, %vm72
    %vm81 = vmand %vm77, %vm73
    %vm82 = vmand %vm78, %vm74
    %v83 = vadd.s32 %v49, 256
    %v84 = vadd.s32 %v56, 256
    %v85 = vadd.s32 %v63, 256
    %v86 = vadd.s32 %v70, 256
    %v87 = vsel %vm79, %v83, %v49
    %v88 = vsel %vm80, %v84, %v56
    %v89 = vsel %vm81, %v85, %v63
    %v90 = vsel %vm82, %v86, %v70
    %vm91 = vcmp.ge.s32.totalorder %v87, 64
    %vm92 = vcmp.ge.s32.totalorder %v88, 64
    %vm93 = vcmp.ge.s32.totalorder %v89, 64
    %vm94 = vcmp.ge.s32.totalorder %v90, 64
    %vm95 = vcmp.lt.s32.totalorder %v39, 0
    %v96 = vsub.s32 0, %v39
    %v97 = vsel %vm95, %v96, %v39
    %v98 = vshrl.u32 %v97, 6
    %v99 = vand.u32 %v97, 63
    %v100 = vsub.s32 0, %v99
    %v101 = vsel %vm95, %v100, %v99
    %vm102 = vcmp.lt.s32.totalorder %v40, 0
    %v103 = vsub.s32 0, %v40
    %v104 = vsel %vm102, %v103, %v40
    %v105 = vshrl.u32 %v104, 6
    %v106 = vand.u32 %v104, 63
    %v107 = vsub.s32 0, %v106
    %v108 = vsel %vm102, %v107, %v106
    %vm109 = vcmp.lt.s32.totalorder %v41, 0
    %v110 = vsub.s32 0, %v41
    %v111 = vsel %vm109, %v110, %v41
    %v112 = vshrl.u32 %v111, 6
    %v113 = vand.u32 %v111, 63
    %v114 = vsub.s32 0, %v113
    %v115 = vsel %vm109, %v114, %v113
    %vm116 = vcmp.lt.s32.totalorder %v42, 0
    %v117 = vsub.s32 0, %v42
    %v118 = vsel %vm116, %v117, %v42
    %v119 = vshrl.u32 %v118, 6
    %v120 = vand.u32 %v118, 63
    %v121 = vsub.s32 0, %v120
    %v122 = vsel %vm116, %v121, %v120
    %vm123 = vcmp.ne.s32.totalorder %v101, 0
    %vm124 = vcmp.ne.s32.totalorder %v108, 0
    %vm125 = vcmp.ne.s32.totalorder %v115, 0
    %vm126 = vcmp.ne.s32.totalorder %v122, 0
    %vm127 = vcmp.lt.s32.totalorder %v101, 0
    %vm128 = vcmp.lt.s32.totalorder %v108, 0
    %vm129 = vcmp.lt.s32.totalorder %v115, 0
    %vm130 = vcmp.lt.s32.totalorder %v122, 0
    %vm131 = vmand %vm127, %vm123
    %vm132 = vmand %vm128, %vm124
    %vm133 = vmand %vm129, %vm125
    %vm134 = vmand %vm130, %vm126
    %v135 = vadd.s32 %v101, 64
    %v136 = vadd.s32 %v108, 64
    %v137 = vadd.s32 %v115, 64
    %v138 = vadd.s32 %v122, 64
    %v139 = vsel %vm131, %v135, %v101
    %v140 = vsel %vm132, %v136, %v108
    %v141 = vsel %vm133, %v137, %v115
    %v142 = vsel %vm134, %v138, %v122
    %vm143 = vcmp.ge.s32.totalorder %v139, 8
    %vm144 = vcmp.ge.s32.totalorder %v140, 8
    %vm145 = vcmp.ge.s32.totalorder %v141, 8
    %vm146 = vcmp.ge.s32.totalorder %v142, 8
    %vm147 = vcmp.lt.s32.totalorder %v39, 0
    %v148 = vsub.s32 0, %v39
    %v149 = vsel %vm147, %v148, %v39
    %v150 = vshrl.u32 %v149, 3
    %v151 = vand.u32 %v149, 7
    %v152 = vsub.s32 0, %v151
    %v153 = vsel %vm147, %v152, %v151
    %vm154 = vcmp.lt.s32.totalorder %v40, 0
    %v155 = vsub.s32 0, %v40
    %v156 = vsel %vm154, %v155, %v40
    %v157 = vshrl.u32 %v156, 3
    %v158 = vand.u32 %v156, 7
    %v159 = vsub.s32 0, %v158
    %v160 = vsel %vm154, %v159, %v158
    %vm161 = vcmp.lt.s32.totalorder %v41, 0
    %v162 = vsub.s32 0, %v41
    %v163 = vsel %vm161, %v162, %v41
    %v164 = vshrl.u32 %v163, 3
    %v165 = vand.u32 %v163, 7
    %v166 = vsub.s32 0, %v165
    %v167 = vsel %vm161, %v166, %v165
    %vm168 = vcmp.lt.s32.totalorder %v42, 0
    %v169 = vsub.s32 0, %v42
    %v170 = vsel %vm168, %v169, %v42
    %v171 = vshrl.u32 %v170, 3
    %v172 = vand.u32 %v170, 7
    %v173 = vsub.s32 0, %v172
    %v174 = vsel %vm168, %v173, %v172
    %vm175 = vcmp.ne.s32.totalorder %v153, 0
    %vm176 = vcmp.ne.s32.totalorder %v160, 0
    %vm177 = vcmp.ne.s32.totalorder %v167, 0
    %vm178 = vcmp.ne.s32.totalorder %v174, 0
    %vm179 = vcmp.lt.s32.totalorder %v153, 0
    %vm180 = vcmp.lt.s32.totalorder %v160, 0
    %vm181 = vcmp.lt.s32.totalorder %v167, 0
    %vm182 = vcmp.lt.s32.totalorder %v174, 0
    %vm183 = vmand %vm179, %vm175
    %vm184 = vmand %vm180, %vm176
    %vm185 = vmand %vm181, %vm177
    %vm186 = vmand %vm182, %vm178
    %v187 = vadd.s32 %v153, 8
    %v188 = vadd.s32 %v160, 8
    %v189 = vadd.s32 %v167, 8
    %v190 = vadd.s32 %v174, 8
    %v191 = vsel %vm183, %v187, %v153
    %v192 = vsel %vm184, %v188, %v160
    %v193 = vsel %vm185, %v189, %v167
    %v194 = vsel %vm186, %v190, %v174
    %vm195 = vcmp.ge.s32.totalorder %v191, 1
    %vm196 = vcmp.ge.s32.totalorder %v192, 1
    %vm197 = vcmp.ge.s32.totalorder %v193, 1
    %vm198 = vcmp.ge.s32.totalorder %v194, 1
    %v199 = vld [vmem:[%s1] sm:$0xf]
    %vm200 = vcmp.gt.f32.partialorder %v34, 0.0
    %vm201 = vcmp.gt.f32.partialorder %v35, 0.0
    %vm202 = vcmp.gt.f32.partialorder %v36, 0.0
    %vm203 = vcmp.gt.f32.partialorder %v37, 0.0
    %v204 = vmin.f32 %v34, 0.0
    %v205 = vmin.f32 %v35, 0.0
    %v206 = vmin.f32 %v36, 0.0
    %v207 = vmin.f32 %v37, 0.0
    %v208 = vmul.f32 %v204, 1.442695
    %v209 = vpow.pop %v208
    %v210 = vmul.f32 %v205, 1.442695
    %v211 = vpow.pop %v210
    %v212 = vmul.f32 %v206, 1.442695
    %v213 = vpow.pop %v212
    %v214 = vmul.f32 %v207, 1.442695
    %v215 = vpow.pop %v214
    %v216 = vsub.f32 %v209, 1.0
    %v217 = vsub.f32 %v211, 1.0
    %v218 = vsub.f32 %v213, 1.0
    %v219 = vsub.f32 %v215, 1.0
    %v220 = vsel %vm200, %v34, %v216
    %v221 = vsel %vm201, %v35, %v217
    %v222 = vsel %vm202, %v36, %v218
    %v223 = vsel %vm203, %v37, %v219
    %224 = vrot.lane.b32.xlu0 %v220, 73
    %v225 = vpop.permute.xlu0 %224
    %226 = vrot.lane.b32.xlu0 %v221, 73
    %v227 = vpop.permute.xlu0 %226
    %228 = vrot.lane.b32.xlu0 %v222, 73
    %v229 = vpop.permute.xlu0 %228
    %230 = vrot.lane.b32.xlu0 %v223, 73
    %v231 = vpop.permute.xlu0 %230
    %vm232 = vcmp.lt.s32.totalorder %v39, 73
    %v233 = vsel %vm232, %v229, %v231
    %v234 = vsel %vm232, %v227, %v229
    %v235 = vsel %vm232, %v225, %v227
    %v236 = vsel %vm232, %v231, %v225
    %vm237 = vmand %vm91, %vm143
    %vm238 = vmand %vm92, %vm144
    %vm239 = vmand %vm93, %vm145
    %vm240 = vmand %vm94, %vm146
    %vm241 = vmand %vm237, %vm195
    %vm242 = vmand %vm238, %vm196
    %vm243 = vmand %vm239, %vm197
    %vm244 = vmand %vm240, %vm198
    %v245 = vsel %vm241, 1, 0
    %v246 = vsel %vm242, 1, 0
    %v247 = vsel %vm243, 1, 0
    %v248 = vsel %vm244, 1, 0
    %vm249 = vcmp.eq.s32.totalorder %v245, 1
    %vm250 = vcmp.eq.s32.totalorder %v246, 1
    %vm251 = vcmp.eq.s32.totalorder %v247, 1
    %vm252 = vcmp.eq.s32.totalorder %v248, 1
    %v253 = vsel %vm249, %v236, 0.0
    %v254 = vsel %vm250, %v235, 0.0
    %v255 = vsel %vm251, %v234, 0.0
    %v256 = vsel %vm252, %v233, 0.0
    %257 = vrot.lane.b32.xlu0 %v220, 72
    %v258 = vpop.permute.xlu0 %257
    %259 = vrot.lane.b32.xlu0 %v221, 72
    %v260 = vpop.permute.xlu0 %259
    %261 = vrot.lane.b32.xlu0 %v222, 72
    %v262 = vpop.permute.xlu0 %261
    %263 = vrot.lane.b32.xlu0 %v223, 72
    %v264 = vpop.permute.xlu0 %263
    %vm265 = vcmp.lt.s32.totalorder %v39, 72
    %v266 = vsel %vm265, %v262, %v264
    %v267 = vsel %vm265, %v260, %v262
    %v268 = vsel %vm265, %v258, %v260
    %v269 = vsel %vm265, %v264, %v258
    %v270 = vsel %vm237, 1, 0
    %v271 = vsel %vm238, 1, 0
    %v272 = vsel %vm239, 1, 0
    %v273 = vsel %vm240, 1, 0
    %vm274 = vcmp.eq.s32.totalorder %v270, 1
    %vm275 = vcmp.eq.s32.totalorder %v271, 1
    %vm276 = vcmp.eq.s32.totalorder %v272, 1
    %vm277 = vcmp.eq.s32.totalorder %v273, 1
    %v278 = vsel %vm274, %v269, 0.0
    %v279 = vsel %vm275, %v268, 0.0
    %v280 = vsel %vm276, %v267, 0.0
    %v281 = vsel %vm277, %v266, 0.0
    %282 = vrot.lane.b32.xlu0 %v220, 65
    %v283 = vpop.permute.xlu0 %282
    %284 = vrot.lane.b32.xlu0 %v221, 65
    %v285 = vpop.permute.xlu0 %284
    %286 = vrot.lane.b32.xlu0 %v222, 65
    %v287 = vpop.permute.xlu0 %286
    %288 = vrot.lane.b32.xlu0 %v223, 65
    %v289 = vpop.permute.xlu0 %288
    %vm290 = vcmp.lt.s32.totalorder %v39, 65
    %v291 = vsel %vm290, %v287, %v289
    %v292 = vsel %vm290, %v285, %v287
    %v293 = vsel %vm290, %v283, %v285
    %v294 = vsel %vm290, %v289, %v283
    %vm295 = vmand %vm91, %vm195
    %vm296 = vmand %vm92, %vm196
    %vm297 = vmand %vm93, %vm197
    %vm298 = vmand %vm94, %vm198
    %v299 = vsel %vm295, 1, 0
    %v300 = vsel %vm296, 1, 0
    %v301 = vsel %vm297, 1, 0
    %v302 = vsel %vm298, 1, 0
    %vm303 = vcmp.eq.s32.totalorder %v299, 1
    %vm304 = vcmp.eq.s32.totalorder %v300, 1
    %vm305 = vcmp.eq.s32.totalorder %v301, 1
    %vm306 = vcmp.eq.s32.totalorder %v302, 1
    %v307 = vsel %vm303, %v294, 0.0
    %v308 = vsel %vm304, %v293, 0.0
    %v309 = vsel %vm305, %v292, 0.0
    %v310 = vsel %vm306, %v291, 0.0
    %311 = vrot.lane.b32.xlu0 %v220, 64
    %v312 = vpop.permute.xlu0 %311
    %313 = vrot.lane.b32.xlu0 %v221, 64
    %v314 = vpop.permute.xlu0 %313
    %315 = vrot.lane.b32.xlu0 %v222, 64
    %v316 = vpop.permute.xlu0 %315
    %317 = vrot.lane.b32.xlu0 %v223, 64
    %v318 = vpop.permute.xlu0 %317
    %vm319 = vcmp.lt.s32.totalorder %v39, 64
    %v320 = vsel %vm319, %v316, %v318
    %v321 = vsel %vm319, %v314, %v316
    %v322 = vsel %vm319, %v312, %v314
    %v323 = vsel %vm319, %v318, %v312
    %v324 = vsel %vm91, 1, 0
    %v325 = vsel %vm92, 1, 0
    %v326 = vsel %vm93, 1, 0
    %v327 = vsel %vm94, 1, 0
    %vm328 = vcmp.eq.s32.totalorder %v324, 1
    %vm329 = vcmp.eq.s32.totalorder %v325, 1
    %vm330 = vcmp.eq.s32.totalorder %v326, 1
    %vm331 = vcmp.eq.s32.totalorder %v327, 1
    %v332 = vsel %vm328, %v323, 0.0
    %v333 = vsel %vm329, %v322, 0.0
    %v334 = vsel %vm330, %v321, 0.0
    %v335 = vsel %vm331, %v320, 0.0
    %336 = vrot.lane.b32.xlu0 %v220, 9
    %v337 = vpop.permute.xlu0 %336
    %338 = vrot.lane.b32.xlu0 %v221, 9
    %v339 = vpop.permute.xlu0 %338
    %340 = vrot.lane.b32.xlu0 %v222, 9
    %v341 = vpop.permute.xlu0 %340
    %342 = vrot.lane.b32.xlu0 %v223, 9
    %v343 = vpop.permute.xlu0 %342
    %vm344 = vcmp.lt.s32.totalorder %v39, 9
    %v345 = vsel %vm344, %v341, %v343
    %v346 = vsel %vm344, %v339, %v341
    %v347 = vsel %vm344, %v337, %v339
    %v348 = vsel %vm344, %v343, %v337
    %vm349 = vmand %vm143, %vm195
    %vm350 = vmand %vm144, %vm196
    %vm351 = vmand %vm145, %vm197
    %vm352 = vmand %vm146, %vm198
    %v353 = vsel %vm349, 1, 0
    %v354 = vsel %vm350, 1, 0
    %v355 = vsel %vm351, 1, 0
    %v356 = vsel %vm352, 1, 0
    %vm357 = vcmp.eq.s32.totalorder %v353, 1
    %vm358 = vcmp.eq.s32.totalorder %v354, 1
    %vm359 = vcmp.eq.s32.totalorder %v355, 1
    %vm360 = vcmp.eq.s32.totalorder %v356, 1
    %v361 = vsel %vm357, %v348, 0.0
    %v362 = vsel %vm358, %v347, 0.0
    %v363 = vsel %vm359, %v346, 0.0
    %v364 = vsel %vm360, %v345, 0.0
    %365 = vrot.lane.b32.xlu0 %v220, 8
    %v366 = vpop.permute.xlu0 %365
    %367 = vrot.lane.b32.xlu0 %v221, 8
    %v368 = vpop.permute.xlu0 %367
    %369 = vrot.lane.b32.xlu0 %v222, 8
    %v370 = vpop.permute.xlu0 %369
    %371 = vrot.lane.b32.xlu0 %v223, 8
    %v372 = vpop.permute.xlu0 %371
    %vm373 = vcmp.lt.s32.totalorder %v39, 8
    %v374 = vsel %vm373, %v370, %v372
    %v375 = vsel %vm373, %v368, %v370
    %v376 = vsel %vm373, %v366, %v368
    %v377 = vsel %vm373, %v372, %v366
    %v378 = vsel %vm143, 1, 0
    %v379 = vsel %vm144, 1, 0
    %v380 = vsel %vm145, 1, 0
    %v381 = vsel %vm146, 1, 0
    %vm382 = vcmp.eq.s32.totalorder %v378, 1
    %vm383 = vcmp.eq.s32.totalorder %v379, 1
    %vm384 = vcmp.eq.s32.totalorder %v380, 1
    %vm385 = vcmp.eq.s32.totalorder %v381, 1
    %v386 = vsel %vm382, %v377, 0.0
    %v387 = vsel %vm383, %v376, 0.0
    %v388 = vsel %vm384, %v375, 0.0
    %v389 = vsel %vm385, %v374, 0.0
    %390 = vrot.lane.b32.xlu0 %v220, 1
    %v391 = vpop.permute.xlu0 %390
    %392 = vrot.lane.b32.xlu0 %v221, 1
    %v393 = vpop.permute.xlu0 %392
    %394 = vrot.lane.b32.xlu0 %v222, 1
    %v395 = vpop.permute.xlu0 %394
    %396 = vrot.lane.b32.xlu0 %v223, 1
    %v397 = vpop.permute.xlu0 %396
    %vm398 = vcmp.lt.s32.totalorder %v39, 1
    %v399 = vsel %vm398, %v395, %v397
    %v400 = vsel %vm398, %v393, %v395
    %v401 = vsel %vm398, %v391, %v393
    %v402 = vsel %vm398, %v397, %v391
    %v403 = vsel %vm195, 1, 0
    %v404 = vsel %vm196, 1, 0
    %v405 = vsel %vm197, 1, 0
    %v406 = vsel %vm198, 1, 0
    %vm407 = vcmp.eq.s32.totalorder %v403, 1
    %vm408 = vcmp.eq.s32.totalorder %v404, 1
    %vm409 = vcmp.eq.s32.totalorder %v405, 1
    %vm410 = vcmp.eq.s32.totalorder %v406, 1
    %v411 = vsel %vm407, %v402, 0.0
    %v412 = vsel %vm408, %v401, 0.0
    %v413 = vsel %vm409, %v400, 0.0
    %v414 = vsel %vm410, %v399, 0.0
    %v415 = vpack.c.bf16 %v278, %v253
    %v416 = vpack.c.bf16 %v279, %v254
    %v417 = vpack.c.bf16 %v280, %v255
    %v418 = vpack.c.bf16 %v281, %v256
    %v419 = vpack.c.bf16 %v332, %v307
    %v420 = vpack.c.bf16 %v333, %v308
    %v421 = vpack.c.bf16 %v334, %v309
    %v422 = vpack.c.bf16 %v335, %v310
    %v423 = vpack.c.bf16 %v386, %v361
    %v424 = vpack.c.bf16 %v387, %v362
    %v425 = vpack.c.bf16 %v388, %v363
    %v426 = vpack.c.bf16 %v389, %v364
    %v427 = vpack.c.bf16 %v220, %v411
    %v428 = vpack.c.bf16 %v221, %v412
    %v429 = vpack.c.bf16 %v222, %v413
    %v430 = vpack.c.bf16 %v223, %v414
    %v431 = vld [vmem:[%s2] sm:$0xff]
    %433 = vset.pattern.permute.xlu0 0
    %434 = vperm.xlu0 %433, %v431
    %v435 = vpop.permute.xlu0 %434
    %vm437 = vcmask 523264
    %v439 = vsel %vm437, %v199, 0
    %441 = vmatprep.subr.bf16.mxu0 %v416
    %442 = vmatpush1.bf16.msra.mxu0 %v415
    %443 = vmatprep.subr.bf16.mxu0 %v420
    %444 = vmatpush1.bf16.msra.mxu0 %v419
    %445 = vmatprep.subr.bf16.mxu0 %v424
    %446 = vmatpush1.bf16.msra.mxu0 %v423
    %447 = vmatprep.subr.bf16.mxu0 %v428
    %448 = vmatpush1.bf16.msra.mxu0 %v427
    %449 = vmatprep.subr.bf16.mxu0 0
    %450 = vmatpush1.bf16.msra.mxu0 0
    %451 = vmatprep.subr.bf16.mxu0 0
    %452 = vmatpush1.bf16.msra.mxu0 0
    %453 = vmatprep.subr.bf16.mxu0 0
    %454 = vmatpush1.bf16.msra.mxu0 0
    %455 = vmatprep.subr.bf16.mxu0 0
    %456 = vmatpush1.bf16.msra.mxu0 0
    %457 = vmatprep.subr.bf16.mxu0 0
    %458 = vmatpush1.bf16.msra.mxu0 0
    %459 = vmatprep.subr.bf16.mxu0 0
    %460 = vmatpush1.bf16.msra.mxu0 0
    %461 = vmatprep.subr.bf16.mxu0 0
    %462 = vmatpush1.bf16.msra.mxu0 0
    %463 = vmatprep.subr.bf16.mxu0 0
    %464 = vmatpush1.bf16.msra.mxu0 0
    %465 = vmatprep.subr.bf16.mxu0 0
    %466 = vmatpush1.bf16.msra.mxu0 0
    %467 = vmatprep.subr.bf16.mxu0 0
    %468 = vmatpush1.bf16.msra.mxu0 0
    %469 = vmatprep.subr.bf16.mxu0 0
    %470 = vmatpush1.bf16.msra.mxu0 0
    %471 = vmatprep.subr.bf16.mxu0 0
    %472 = vmatpush1.bf16.msra.mxu0 0
    %473 = vmatprep.mubr.bf16.mxu0 0
    %474 = vmatmul.mubr.bf16.gmra.mrb[0].mxu0 %v439
    %v475 = vpop.f32.mrb[0].mxu0
    %v476 = vadd.f32 %v435, %v475
    %v477 = vpop.f32.mrb[0].mxu0
    %v478 = vadd.f32 %v435, %v477
    %v479 = vpop.f32.mrb[0].mxu0
    %v480 = vpop.f32.mrb[0].mxu0
    %481 = vdwg.mxu0
    %482 = vmatprep.subr.bf16.mxu0 %v418
    %483 = vmatpush1.bf16.msra.mxu0 %v417
    %484 = vmatprep.subr.bf16.mxu0 %v422
    %485 = vmatpush1.bf16.msra.mxu0 %v421
    %486 = vmatprep.subr.bf16.mxu0 %v426
    %487 = vmatpush1.bf16.msra.mxu0 %v425
    %488 = vmatprep.subr.bf16.mxu0 %v430
    %489 = vmatpush1.bf16.msra.mxu0 %v429
    %490 = vmatprep.subr.bf16.mxu0 0
    %491 = vmatpush1.bf16.msra.mxu0 0
    %492 = vmatprep.subr.bf16.mxu0 0
    %493 = vmatpush1.bf16.msra.mxu0 0
    %494 = vmatprep.subr.bf16.mxu0 0
    %495 = vmatpush1.bf16.msra.mxu0 0
    %496 = vmatprep.subr.bf16.mxu0 0
    %497 = vmatpush1.bf16.msra.mxu0 0
    %498 = vmatprep.subr.bf16.mxu0 0
    %499 = vmatpush1.bf16.msra.mxu0 0
    %500 = vmatprep.subr.bf16.mxu0 0
    %501 = vmatpush1.bf16.msra.mxu0 0
    %502 = vmatprep.subr.bf16.mxu0 0
    %503 = vmatpush1.bf16.msra.mxu0 0
    %504 = vmatprep.subr.bf16.mxu0 0
    %505 = vmatpush1.bf16.msra.mxu0 0
    %506 = vmatprep.subr.bf16.mxu0 0
    %507 = vmatpush1.bf16.msra.mxu0 0
    %508 = vmatprep.subr.bf16.mxu0 0
    %509 = vmatpush1.bf16.msra.mxu0 0
    %510 = vmatprep.subr.bf16.mxu0 0
    %511 = vmatpush1.bf16.msra.mxu0 0
    %512 = vmatprep.subr.bf16.mxu0 0
    %513 = vmatpush1.bf16.msra.mxu0 0
    %514 = vmatprep.mubr.bf16.mxu0 0
    %515 = vmatmul.mubr.bf16.gmra.mrb[0].mxu0 %v439
    %v516 = vpop.f32.mrb[0].mxu0
    %v517 = vadd.f32 %v435, %v516
    %v518 = vpop.f32.mrb[0].mxu0
    %v519 = vadd.f32 %v435, %v518
    %v520 = vpop.f32.mrb[0].mxu0
    %v521 = vpop.f32.mrb[0].mxu0
    %522 = vdwg.mxu0
    %vm523 = vcmp.gt.f32.partialorder %v476, 0.0
    %vm524 = vcmp.gt.f32.partialorder %v478, 0.0
    %vm525 = vcmp.gt.f32.partialorder %v517, 0.0
    %vm526 = vcmp.gt.f32.partialorder %v519, 0.0
    %v527 = vmin.f32 %v476, 0.0
    %v528 = vmin.f32 %v478, 0.0
    %v529 = vmin.f32 %v517, 0.0
    %v530 = vmin.f32 %v519, 0.0
    %v531 = vmul.f32 %v527, 1.442695
    %v532 = vpow.pop %v531
    %v533 = vmul.f32 %v528, 1.442695
    %v534 = vpow.pop %v533
    %v535 = vmul.f32 %v529, 1.442695
    %v536 = vpow.pop %v535
    %v537 = vmul.f32 %v530, 1.442695
    %v538 = vpow.pop %v537
    %v539 = vsub.f32 %v532, 1.0
    %v540 = vsub.f32 %v534, 1.0
    %v541 = vsub.f32 %v536, 1.0
    %v542 = vsub.f32 %v538, 1.0
    %v543 = vsel %vm523, %v476, %v539
    %v544 = vsel %vm524, %v478, %v540
    %v545 = vsel %vm525, %v517, %v541
    %v546 = vsel %vm526, %v519, %v542
    %v547 = vld [vmem:[%s3] sm:$0xf]
    %v548 = vld [vmem:[%s3 + $0x4] sm:$0xf]
    %549 = vrot.lane.b32.xlu0 %v543, 73
    %v550 = vpop.permute.xlu0 %549
    %551 = vrot.lane.b32.xlu0 %v544, 73
    %v552 = vpop.permute.xlu0 %551
    %553 = vrot.lane.b32.xlu0 %v545, 73
    %v554 = vpop.permute.xlu0 %553
    %555 = vrot.lane.b32.xlu0 %v546, 73
    %v556 = vpop.permute.xlu0 %555
    %v557 = vsel %vm232, %v554, %v556
    %v558 = vsel %vm232, %v552, %v554
    %v559 = vsel %vm232, %v550, %v552
    %v560 = vsel %vm232, %v556, %v550
    %v561 = vsel %vm249, %v560, 0.0
    %v562 = vsel %vm250, %v559, 0.0
    %v563 = vsel %vm251, %v558, 0.0
    %v564 = vsel %vm252, %v557, 0.0
    %565 = vrot.lane.b32.xlu0 %v543, 72
    %v566 = vpop.permute.xlu0 %565
    %567 = vrot.lane.b32.xlu0 %v544, 72
    %v568 = vpop.permute.xlu0 %567
    %569 = vrot.lane.b32.xlu0 %v545, 72
    %v570 = vpop.permute.xlu0 %569
    %571 = vrot.lane.b32.xlu0 %v546, 72
    %v572 = vpop.permute.xlu0 %571
    %v573 = vsel %vm265, %v570, %v572
    %v574 = vsel %vm265, %v568, %v570
    %v575 = vsel %vm265, %v566, %v568
    %v576 = vsel %vm265, %v572, %v566
    %v577 = vsel %vm274, %v576, 0.0
    %v578 = vsel %vm275, %v575, 0.0
    %v579 = vsel %vm276, %v574, 0.0
    %v580 = vsel %vm277, %v573, 0.0
    %581 = vrot.lane.b32.xlu0 %v543, 65
    %v582 = vpop.permute.xlu0 %581
    %583 = vrot.lane.b32.xlu0 %v544, 65
    %v584 = vpop.permute.xlu0 %583
    %585 = vrot.lane.b32.xlu0 %v545, 65
    %v586 = vpop.permute.xlu0 %585
    %587 = vrot.lane.b32.xlu0 %v546, 65
    %v588 = vpop.permute.xlu0 %587
    %v589 = vsel %vm290, %v586, %v588
    %v590 = vsel %vm290, %v584, %v586
    %v591 = vsel %vm290, %v582, %v584
    %v592 = vsel %vm290, %v588, %v582
    %v593 = vsel %vm303, %v592, 0.0
    %v594 = vsel %vm304, %v591, 0.0
    %v595 = vsel %vm305, %v590, 0.0
    %v596 = vsel %vm306, %v589, 0.0
    %597 = vrot.lane.b32.xlu0 %v543, 64
    %v598 = vpop.permute.xlu0 %597
    %599 = vrot.lane.b32.xlu0 %v544, 64
    %v600 = vpop.permute.xlu0 %599
    %601 = vrot.lane.b32.xlu0 %v545, 64
    %v602 = vpop.permute.xlu0 %601
    %603 = vrot.lane.b32.xlu0 %v546, 64
    %v604 = vpop.permute.xlu0 %603
    %v605 = vsel %vm319, %v602, %v604
    %v606 = vsel %vm319, %v600, %v602
    %v607 = vsel %vm319, %v598, %v600
    %v608 = vsel %vm319, %v604, %v598
    %v609 = vsel %vm328, %v608, 0.0
    %v610 = vsel %vm329, %v607, 0.0
    %v611 = vsel %vm330, %v606, 0.0
    %v612 = vsel %vm331, %v605, 0.0
    %613 = vrot.lane.b32.xlu0 %v543, 9
    %v614 = vpop.permute.xlu0 %613
    %615 = vrot.lane.b32.xlu0 %v544, 9
    %v616 = vpop.permute.xlu0 %615
    %617 = vrot.lane.b32.xlu0 %v545, 9
    %v618 = vpop.permute.xlu0 %617
    %619 = vrot.lane.b32.xlu0 %v546, 9
    %v620 = vpop.permute.xlu0 %619
    %v621 = vsel %vm344, %v618, %v620
    %v622 = vsel %vm344, %v616, %v618
    %v623 = vsel %vm344, %v614, %v616
    %v624 = vsel %vm344, %v620, %v614
    %v625 = vsel %vm357, %v624, 0.0
    %v626 = vsel %vm358, %v623, 0.0
    %v627 = vsel %vm359, %v622, 0.0
    %v628 = vsel %vm360, %v621, 0.0
    %629 = vrot.lane.b32.xlu0 %v543, 8
    %v630 = vpop.permute.xlu0 %629
    %631 = vrot.lane.b32.xlu0 %v544, 8
    %v632 = vpop.permute.xlu0 %631
    %633 = vrot.lane.b32.xlu0 %v545, 8
    %v634 = vpop.permute.xlu0 %633
    %635 = vrot.lane.b32.xlu0 %v546, 8
    %v636 = vpop.permute.xlu0 %635
    %v637 = vsel %vm373, %v634, %v636
    %v638 = vsel %vm373, %v632, %v634
    %v639 = vsel %vm373, %v630, %v632
    %v640 = vsel %vm373, %v636, %v630
    %v641 = vsel %vm382, %v640, 0.0
    %v642 = vsel %vm383, %v639, 0.0
    %v643 = vsel %vm384, %v638, 0.0
    %v644 = vsel %vm385, %v637, 0.0
    %645 = vrot.lane.b32.xlu0 %v543, 1
    %v646 = vpop.permute.xlu0 %645
    %647 = vrot.lane.b32.xlu0 %v544, 1
    %v648 = vpop.permute.xlu0 %647
    %649 = vrot.lane.b32.xlu0 %v545, 1
    %v650 = vpop.permute.xlu0 %649
    %651 = vrot.lane.b32.xlu0 %v546, 1
    %v652 = vpop.permute.xlu0 %651
    %v653 = vsel %vm398, %v650, %v652
    %v654 = vsel %vm398, %v648, %v650
    %v655 = vsel %vm398, %v646, %v648
    %v656 = vsel %vm398, %v652, %v646
    %v657 = vsel %vm407, %v656, 0.0
    %v658 = vsel %vm408, %v655, 0.0
    %v659 = vsel %vm409, %v654, 0.0
    %v660 = vsel %vm410, %v653, 0.0
    %v661 = vpack.c.bf16 %v577, %v561
    %v662 = vpack.c.bf16 %v578, %v562
    %v663 = vpack.c.bf16 %v579, %v563
    %v664 = vpack.c.bf16 %v580, %v564
    %v665 = vpack.c.bf16 %v609, %v593
    %v666 = vpack.c.bf16 %v610, %v594
    %v667 = vpack.c.bf16 %v611, %v595
    %v668 = vpack.c.bf16 %v612, %v596
    %v669 = vpack.c.bf16 %v641, %v625
    %v670 = vpack.c.bf16 %v642, %v626
    %v671 = vpack.c.bf16 %v643, %v627
    %v672 = vpack.c.bf16 %v644, %v628
    %v673 = vpack.c.bf16 %v543, %v657
    %v674 = vpack.c.bf16 %v544, %v658
    %v675 = vpack.c.bf16 %v545, %v659
    %v676 = vpack.c.bf16 %v546, %v660
    %v677 = vld [vmem:[%s4] sm:$0xff]
    %v678 = vld [vmem:[%s4 + $0x8] sm:$0xff]
    %680 = vset.pattern.permute.xlu0 0
    %681 = vperm.xlu0 %680, %v677
    %v682 = vpop.permute.xlu0 %681
    %685 = vset.pattern.permute.xlu0 0
    %686 = vperm.xlu0 %685, %v678
    %v687 = vpop.permute.xlu0 %686
    %v691 = vunpack.c.l.b16 %v547
    %v692 = vunpack.c.l.b16 %v548
    %v693 = vpack.c.b16 %v692, %v691
    %v695 = vsel %vm437, %v693, 0
    %697 = vmatprep.subr.bf16.mxu0 %v662
    %698 = vmatpush1.bf16.msra.mxu0 %v661
    %699 = vmatprep.subr.bf16.mxu0 %v666
    %700 = vmatpush1.bf16.msra.mxu0 %v665
    %701 = vmatprep.subr.bf16.mxu0 %v670
    %702 = vmatpush1.bf16.msra.mxu0 %v669
    %703 = vmatprep.subr.bf16.mxu0 %v674
    %704 = vmatpush1.bf16.msra.mxu0 %v673
    %705 = vmatprep.subr.bf16.mxu0 0
    %706 = vmatpush1.bf16.msra.mxu0 0
    %707 = vmatprep.subr.bf16.mxu0 0
    %708 = vmatpush1.bf16.msra.mxu0 0
    %709 = vmatprep.subr.bf16.mxu0 0
    %710 = vmatpush1.bf16.msra.mxu0 0
    %711 = vmatprep.subr.bf16.mxu0 0
    %712 = vmatpush1.bf16.msra.mxu0 0
    %713 = vmatprep.subr.bf16.mxu0 0
    %714 = vmatpush1.bf16.msra.mxu0 0
    %715 = vmatprep.subr.bf16.mxu0 0
    %716 = vmatpush1.bf16.msra.mxu0 0
    %717 = vmatprep.subr.bf16.mxu0 0
    %718 = vmatpush1.bf16.msra.mxu0 0
    %719 = vmatprep.subr.bf16.mxu0 0
    %720 = vmatpush1.bf16.msra.mxu0 0
    %721 = vmatprep.subr.bf16.mxu0 0
    %722 = vmatpush1.bf16.msra.mxu0 0
    %723 = vmatprep.subr.bf16.mxu0 0
    %724 = vmatpush1.bf16.msra.mxu0 0
    %725 = vmatprep.subr.bf16.mxu0 0
    %726 = vmatpush1.bf16.msra.mxu0 0
    %727 = vmatprep.subr.bf16.mxu0 0
    %728 = vmatpush1.bf16.msra.mxu0 0
    %729 = vmatprep.mubr.bf16.mxu0 0
    %730 = vmatmul.mubr.bf16.gmra.mrb[0].mxu0 %v695
    %v731 = vpop.f32.mrb[0].mxu0
    %v732 = vadd.f32 %v682, %v731
    %v733 = vpop.f32.mrb[0].mxu0
    %v734 = vadd.f32 %v682, %v733
    %v735 = vpop.f32.mrb[0].mxu0
    %v736 = vadd.f32 %v687, %v735
    %v737 = vpop.f32.mrb[0].mxu0
    %v738 = vadd.f32 %v687, %v737
    %739 = vdwg.mxu0
    %740 = vmatprep.subr.bf16.mxu0 %v664
    %741 = vmatpush1.bf16.msra.mxu0 %v663
    %742 = vmatprep.subr.bf16.mxu0 %v668
    %743 = vmatpush1.bf16.msra.mxu0 %v667
    %744 = vmatprep.subr.bf16.mxu0 %v672
    %745 = vmatpush1.bf16.msra.mxu0 %v671
    %746 = vmatprep.subr.bf16.mxu0 %v676
    %747 = vmatpush1.bf16.msra.mxu0 %v675
    %748 = vmatprep.subr.bf16.mxu0 0
    %749 = vmatpush1.bf16.msra.mxu0 0
    %750 = vmatprep.subr.bf16.mxu0 0
    %751 = vmatpush1.bf16.msra.mxu0 0
    %752 = vmatprep.subr.bf16.mxu0 0
    %753 = vmatpush1.bf16.msra.mxu0 0
    %754 = vmatprep.subr.bf16.mxu0 0
    %755 = vmatpush1.bf16.msra.mxu0 0
    %756 = vmatprep.subr.bf16.mxu0 0
    %757 = vmatpush1.bf16.msra.mxu0 0
    %758 = vmatprep.subr.bf16.mxu0 0
    %759 = vmatpush1.bf16.msra.mxu0 0
    %760 = vmatprep.subr.bf16.mxu0 0
    %761 = vmatpush1.bf16.msra.mxu0 0
    %762 = vmatprep.subr.bf16.mxu0 0
    %763 = vmatpush1.bf16.msra.mxu0 0
    %764 = vmatprep.subr.bf16.mxu0 0
    %765 = vmatpush1.bf16.msra.mxu0 0
    %766 = vmatprep.subr.bf16.mxu0 0
    %767 = vmatpush1.bf16.msra.mxu0 0
    %768 = vmatprep.subr.bf16.mxu0 0
    %769 = vmatpush1.bf16.msra.mxu0 0
    %770 = vmatprep.subr.bf16.mxu0 0
    %771 = vmatpush1.bf16.msra.mxu0 0
    %772 = vmatprep.mubr.bf16.mxu0 0
    %773 = vmatmul.mubr.bf16.gmra.mrb[0].mxu0 %v695
    %v774 = vpop.f32.mrb[0].mxu0
    %v775 = vadd.f32 %v682, %v774
    %v776 = vpop.f32.mrb[0].mxu0
    %v777 = vadd.f32 %v682, %v776
    %v778 = vpop.f32.mrb[0].mxu0
    %v779 = vadd.f32 %v687, %v778
    %v780 = vpop.f32.mrb[0].mxu0
    %v781 = vadd.f32 %v687, %v780
    %782 = vdwg.mxu0
    %v783 = vsub.f32 0.0, %v736
    %v784 = vsub.f32 0.0, %v738
    %v785 = vsub.f32 0.0, %v779
    %v786 = vsub.f32 0.0, %v781
    %v787 = vmul.f32 %v783, 1.442695
    %v788 = vpow.pop %v787
    %v789 = vmul.f32 %v784, 1.442695
    %v790 = vpow.pop %v789
    %v791 = vmul.f32 %v785, 1.442695
    %v792 = vpow.pop %v791
    %v793 = vmul.f32 %v786, 1.442695
    %v794 = vpow.pop %v793
    %v795 = vadd.f32 %v788, 1.0
    %v796 = vadd.f32 %v790, 1.0
    %v797 = vadd.f32 %v792, 1.0
    %v798 = vadd.f32 %v794, 1.0
    %v799 = vrcp.pop %v795
    %v800 = vrcp.pop %v796
    %v801 = vrcp.pop %v797
    %v802 = vrcp.pop %v798
    %v803 = vmul.f32 %v732, %v799
    %v804 = vmul.f32 %v734, %v800
    %v805 = vmul.f32 %v775, %v801
    %v806 = vmul.f32 %v777, %v802
    %v807 = vadd.f32 %v34, %v803
    %v808 = vadd.f32 %v35, %v804
    %v809 = vadd.f32 %v36, %v805
    %v810 = vadd.f32 %v37, %v806
    %811 = vst [vmem:[#allocation5] sm:$0xff] %v807
    %812 = vst [vmem:[#allocation5 + $0x8] sm:$0xff] %v808
    %813 = vst [vmem:[#allocation5 + $0x10] sm:$0xff] %v809
    %814 = vst [vmem:[#allocation5 + $0x18] sm:$0xff] %v810
    // Predicated region
    $region26: #{tpu_custom_call.1} parent=1 // pred_check
      _
    $region27: #{tpu_custom_call.1} parent=1 // pred_check_branch
      %816 = sbr.rel (0) target = $region29
    $region28: #{tpu_custom_call.1} parent=1 // pred_region
      %s818 = ssub.s32 512, 512
      %819 = vsyncadd [#allocation4], %s818
      %s821 = sshll.u32 [#allocation5], 4
      %s822 = int_to_ptr.vmem [resolvable:$true] %s821
      %824 = dma.vmem_to_hbm [thread:$0]  %s822, 512, %s5, [#allocation4]
    $region29: #{tpu_custom_call.1} parent=1 // pred_fallthru
      _
    // Predicated region
    $region30: #{tpu_custom_call.1} parent=1 // pred_check
      _
    $region31: #{tpu_custom_call.1} parent=1 // pred_check_branch
      %826 = sbr.rel (0) target = $region33
    $region32: #{tpu_custom_call.1} parent=1 // pred_region
      %827 = dma.done [#allocation4], 512
    $region33: #{tpu_custom_call.1} parent=1 // pred_fallthru
      _
    %828 = vsyncpa [#allocation3], 1
    %829 = vsyncpa [#allocation4], 1

</llo_original>
